<compile_context>
chip_gen: v7x
topology: tpu7x:2x2x1
jax: 0.10.0
libtpu: 0.0.40
codegen_flags: <defaults>
</compile_context>

<pallas_src>
import functools

import jax
import jax.numpy as jnp
from jax.experimental import pallas as pl
from jax.experimental.pallas import tpu as pltpu


def _round_up(x: int, m: int) -> int:
    return ((x + m - 1) // m) * m


def _cdiv(a: int, b: int) -> int:
    return -(-a // b)


def _apply_act(y, act_fn: str):
    act_fn = act_fn.lower()
    if act_fn == "relu":
        return jnp.maximum(y, 0.0)
    if act_fn == "tanh":
        return jnp.tanh(y)
    if act_fn == "sigmoid":
        return jax.nn.sigmoid(y)
    if act_fn == "swish":
        return y * jax.nn.sigmoid(y)
    if act_fn == "identity":
        return y
    raise NotImplementedError(f"Activation function {act_fn} not implemented.")


def _vmem_ceiling_bytes() -> int:
    """Generation-aware VMEM ceiling: ~75% of physical VMEM, capped at 100 MiB.

    v5e/v6e (128 MiB) -> ~96 MiB, v7x (64 MiB) -> 48 MiB.  Falls back to the
    conservative v7x figure if the hardware query is unavailable.
    """
    cap = 64 << 20
    try:
        info = pltpu.get_tpu_info()
        cap = int(getattr(info, "vmem_capacity_bytes", cap))
    except Exception:
        pass
    return int(min(cap * 3 // 4, 100 << 20))


def fused_mlp_kernel(x_ref, *refs, num_layers: int, act_fn: str):
    """Whole MLP backbone in one kernel.

    refs = (w0, b0, w1, b1, ..., w_{L-1}, b_{L-1}, out_ref).  Matmul operands
    stay in their stored dtype (f32 or bf16 MXU operands); accumulation,
    bias-add and the activation are f32 on the VPU (matters on v5e: no bf16
    VALU/EUP).
    """
    out_ref = refs[-1]
    h = x_ref[...]  # no layer-0 dtype roundtrip
    for layer in range(num_layers):
        w = refs[2 * layer][...]
        b = refs[2 * layer + 1][...]  # (1, out_pad) f32, broadcasts over rows
        if h.dtype != w.dtype:
            h = h.astype(w.dtype)  # only the bf16 path after layer 0
        y = jnp.dot(h, w, preferred_element_type=jnp.float32) + b
        h = _apply_act(y, act_fn)
    out_ref[...] = h.astype(out_ref.dtype)


def fused_mlp_forward(x, padded_params, *, act_fn, out_dim, compute_dtype,
                      out_dtype, batch_tile=1024, vmem_ceiling=48 << 20):
    """Run the full Linear+activation stack in one pallas_call.

    x: (B, in_dim); padded_params: list of (w_p, b_p) already padded/cast in
    __init__ — w_p: (in_pad_l, out_pad_l) compute_dtype, b_p: (1, out_pad_l) f32.
    """
    B, in_dim = x.shape
    num_layers = len(padded_params)
    in_pad = padded_params[0][0].shape[0]
    pdims = [in_pad] + [w.shape[1] for w, _ in padded_params]

    # Batch blocking: near-equal 8-aligned chunks (padding < 8 rows per block),
    # >=2 blocks whenever B_pad > 8 so v7x's 2 TensorCores both get work.
    B8 = _round_up(B, 8)
    n_blocks = max(_cdiv(B8, batch_tile), 2 if B8 > 8 else 1)
    TB = _round_up(_cdiv(B8, n_blocks), 8)
    n_blocks = _cdiv(B8, TB)
    B_pad = TB * n_blocks
    grid = (n_blocks,)

    # Input stays feature-unpadded in HBM (just rounded up to 8 columns so the
    # first weight's K rows tile cleanly).  Zero pad rows/cols are inert.
    x_c = x if x.dtype == compute_dtype else x.astype(compute_dtype)
    if (B_pad, in_pad) != (B, in_dim):
        x_p = jnp.zeros((B_pad, in_pad), compute_dtype).at[:B, :in_dim].set(x_c)
    else:
        x_p = x_c

    in_bpe = jnp.dtype(compute_dtype).itemsize
    out_bpe = jnp.dtype(out_dtype).itemsize
    w_bytes = sum(pdims[l] * pdims[l + 1] * in_bpe + pdims[l + 1] * 4
                  for l in range(num_layers))

    # Resident operands (constant index_map) never get re-fetched; when they
    # are big enough for double-buffering to matter, request a single buffer
    # so large hidden dims survive v7x's 64 MiB physical VMEM.
    single_buffer_weights = w_bytes > (4 << 20)

    def _resident_spec(shape):
        if single_buffer_weights:
            try:
                return pl.BlockSpec(shape, lambda i: (0, 0),
                                    pipeline_mode=pl.Buffered(1))
            except (TypeError, AttributeError):
                pass  # older jax without pipeline_mode: default buffering
        return pl.BlockSpec(shape, lambda i: (0, 0))

    inputs = [x_p]
    # Last block dim == full array dim is legal even when in_pad < 128.
    in_specs = [pl.BlockSpec((TB, in_pad), lambda i: (i, 0))]
    for w_p, b_p in padded_params:
        inputs += [w_p, b_p]
        in_specs += [_resident_spec(w_p.shape), _resident_spec(b_p.shape)]

    # VMEM budget: double-buffered x/out blocks + resident weights (x1 or x2)
    # + f32 intermediate headroom; clamped by the hardware-derived ceiling.
    io_bytes = 2 * TB * in_pad * in_bpe + 2 * TB * pdims[-1] * out_bpe
    wbuf_bytes = w_bytes * (1 if single_buffer_weights else 2)
    act_bytes = 2 * TB * max(pdims) * 4
    vmem_limit = int(min(max(io_bytes + wbuf_bytes + act_bytes + (4 << 20),
                             16 << 20), vmem_ceiling))

    flops = 2 * B_pad * sum(pdims[l] * pdims[l + 1] for l in range(num_layers))
    transcendentals = (0 if act_fn.lower() in ("relu", "identity")
                       else B_pad * sum(pdims[1:]))
    bytes_accessed = (B_pad * in_pad * in_bpe + B_pad * pdims[-1] * out_bpe
                      + w_bytes)
    cost = pl.CostEstimate(flops=flops, transcendentals=transcendentals,
                           bytes_accessed=bytes_accessed)

    kernel = functools.partial(fused_mlp_kernel, num_layers=num_layers,
                               act_fn=act_fn)
    out = pl.pallas_call(
        kernel,
        out_shape=jax.ShapeDtypeStruct((B_pad, pdims[-1]), out_dtype),
        grid=grid,
        in_specs=in_specs,
        out_specs=pl.BlockSpec((TB, pdims[-1]), lambda i: (i, 0)),
        compiler_params=pltpu.CompilerParams(
            dimension_semantics=("parallel",),  # batch blocks shard across TCs
            vmem_limit_bytes=vmem_limit,
        ),
        cost_estimate=cost,
    )(*inputs)

    return out[:B, :out_dim]


class BasePolicyNetworkPallas:
    """JAX/Pallas re-implementation of BasePolicyNetwork's hidden backbone.

    Mirrors: hidden_dims = [input_dim] + hidden_dims; for each consecutive pair
    a Linear followed by the chosen activation, all fused into one TPU kernel.
    """

    def __init__(self, input_dim, action_dim, hidden_dims, act_fn="relu", *,
                 key, compute_dtype=jnp.float32, out_dtype=None,
                 batch_tile=1024):
        if isinstance(hidden_dims, int):
            hidden_dims = [hidden_dims]
        dims = [input_dim] + list(hidden_dims)
        self.act_fn = act_fn
        self.action_dim = action_dim  # from Discrete/Box/MultiBinary action_space
        out_dtype = compute_dtype if out_dtype is None else out_dtype

        # Raw (unpadded, f32) params with PyTorch nn.Linear default init
        # (uniform in [-1/sqrt(fan_in), 1/sqrt(fan_in)]); stored transposed
        # (in, out) so the kernel computes y = act(x @ W + b).
        self.params = []
        for i in range(len(dims) - 1):
            fan_in, fan_out = dims[i], dims[i + 1]
            key, wkey, bkey = jax.random.split(key, 3)
            bound = 1.0 / float(fan_in) ** 0.5
            w = jax.random.uniform(wkey, (fan_in, fan_out), jnp.float32,
                                   minval=-bound, maxval=bound)
            b = jax.random.uniform(bkey, (fan_out,), jnp.float32,
                                   minval=-bound, maxval=bound)
            self.params.append((w, b))

        # Pre-pad + pre-cast ONCE (not per forward call): hidden/output feature
        # dims to multiples of 128 lanes, the input K dim only to 8; weights in
        # compute_dtype, biases in f32.  Padded entries are exactly zero (see
        # invariant at top of file).
        in_pad = _round_up(input_dim, 8)
        pdims = [in_pad] + [_round_up(d, 128) for d in dims[1:]]
        self.params_padded = []
        for i, (w, b) in enumerate(self.params):
            di, do = w.shape
            pi, po = pdims[i], pdims[i + 1]
            w_p = jnp.zeros((pi, po), jnp.float32).at[:di, :do].set(w)
            w_p = w_p.astype(compute_dtype)
            b_p = jnp.zeros((1, po), jnp.float32).at[0, :do].set(b)
            self.params_padded.append((w_p, b_p))

        # One jitted, fused forward — no per-layer Python dispatch, no per-call
        # weight padding ops.
        self._forward = jax.jit(functools.partial(
            fused_mlp_forward, act_fn=act_fn, out_dim=dims[-1],
            compute_dtype=compute_dtype, out_dtype=out_dtype,
            batch_tile=batch_tile, vmem_ceiling=_vmem_ceiling_bytes()))

    def forward(self, state):
        # Equivalent of nn.Sequential(*self.hidden_layers)(state) in subclasses.
        # TODO(synk): forward()/sample()/evaluate_actions() are abstract in the
        # base class; the distribution head (Categorical/Normal) lives in
        # subclasses and is not implemented here.
        return self._forward(state, self.params_padded)


if __name__ == "__main__":
    key = jax.random.PRNGKey(0)
    key, xkey, pkey = jax.random.split(key, 3)

    batch = 8
    input_dim = 16
    hidden_dims = [32, 32]
    action_dim = 4  # e.g. Discrete(4)

    net = BasePolicyNetworkPallas(input_dim, action_dim, hidden_dims,
                                  act_fn="relu", key=pkey)
    state = jax.random.normal(xkey, (batch, input_dim), dtype=jnp.float32)

    out = jax.block_until_ready(net.forward(state))

    # Plain-JAX reference of the backbone.
    ref = state
    for w, b in net.params:
        ref = jnp.maximum(ref @ w + b[None, :], 0.0)

    assert out.shape == (batch, hidden_dims[-1])
    assert out.dtype == jnp.float32
    assert jnp.allclose(out, ref, atol=1e-5, rtol=1e-5)

    # bf16 path: bf16 x / weights / output in HBM, f32 accumulate + activation.
    # Non-multiple-of-8 batch exercises the row-padding path.
    net_bf16 = BasePolicyNetworkPallas(input_dim, action_dim, hidden_dims,
                                       act_fn="relu", key=pkey,
                                       compute_dtype=jnp.bfloat16)
    state_small = state[:5]
    out_bf16 = jax.block_until_ready(net_bf16.forward(state_small))
    assert out_bf16.shape == (5, hidden_dims[-1])
    assert jnp.allclose(out_bf16.astype(jnp.float32), ref[:5],
                        atol=1e-2, rtol=2e-2)

    # Larger, non-aligned batch: exercises the multi-block grid (>=2 blocks so
    # both v7x TensorCores are used) and near-equal 8-aligned chunking.
    state_big = jax.random.normal(key, (517, input_dim), dtype=jnp.float32)
    out_big = jax.block_until_ready(net.forward(state_big))
    ref_big = state_big
    for w, b in net.params:
        ref_big = jnp.maximum(ref_big @ w + b[None, :], 0.0)
    assert out_big.shape == (517, hidden_dims[-1])
    assert jnp.allclose(out_big, ref_big, atol=1e-5, rtol=1e-5)

    print("KERNEL_OK")
</pallas_src>

<mosaic_0001>
module attributes {stable_mosaic.version = 11 : i64} {
  func.func @fused_mlp_kernel(%arg0: i32, %arg1: memref<8x16xf32, #tpu.memory_space<vmem>>, %arg2: memref<16x128xf32, #tpu.memory_space<vmem>>, %arg3: memref<1x128xf32, #tpu.memory_space<vmem>>, %arg4: memref<128x128xf32, #tpu.memory_space<vmem>>, %arg5: memref<1x128xf32, #tpu.memory_space<vmem>>, %arg6: memref<8x128xf32, #tpu.memory_space<vmem>>) attributes {dimension_semantics = [#tpu.dimension_semantics<parallel>], iteration_bounds = array<i64: 1>, scalar_prefetch = 0 : i64, scratch_operands = 0 : i64, tpu.core_type = #tpu.core_type<tc>, window_params = [{transform_indices = @transform_0, window_bounds = array<i64: 8, 16>}, {pipeline_mode = #tpu.pipeline_mode<synchronous>, transform_indices = @transform_1, window_bounds = array<i64: 16, 128>}, {pipeline_mode = #tpu.pipeline_mode<synchronous>, transform_indices = @transform_2, window_bounds = array<i64: 1, 128>}, {pipeline_mode = #tpu.pipeline_mode<synchronous>, transform_indices = @transform_3, window_bounds = array<i64: 128, 128>}, {pipeline_mode = #tpu.pipeline_mode<synchronous>, transform_indices = @transform_4, window_bounds = array<i64: 1, 128>}, {transform_indices = @transform_5, window_bounds = array<i64: 8, 128>}]} {
    %c0 = arith.constant 0 : index
    %c0_0 = arith.constant 0 : index
    %0 = vector.load %arg1[%c0, %c0_0] : memref<8x16xf32, #tpu.memory_space<vmem>>, vector<8x16xf32>
    %c0_1 = arith.constant 0 : index
    %c0_2 = arith.constant 0 : index
    %1 = vector.load %arg2[%c0_1, %c0_2] : memref<16x128xf32, #tpu.memory_space<vmem>>, vector<16x128xf32>
    %c0_3 = arith.constant 0 : index
    %c0_4 = arith.constant 0 : index
    %2 = vector.load %arg3[%c0_3, %c0_4] : memref<1x128xf32, #tpu.memory_space<vmem>>, vector<1x128xf32>
    %cst = arith.constant dense<0.000000e+00> : vector<8x128xf32>
    %3 = tpu.matmul %0, %1, %cst {dimension_numbers = #tpu.dot_dimension_numbers<[1], [0], [0], [1], [0, 0, 1, 1], [], []>} : vector<8x16xf32>, vector<16x128xf32>, vector<8x128xf32> -> vector<8x128xf32>
    %4 = vector.broadcast %2 : vector<1x128xf32> to vector<8x128xf32>
    %5 = arith.addf %3, %4 : vector<8x128xf32>
    %cst_5 = arith.constant 0.000000e+00 : f32
    %6 = vector.broadcast %cst_5 : f32 to vector<8x128xf32>
    %7 = arith.maximumf %5, %6 : vector<8x128xf32>
    %c0_6 = arith.constant 0 : index
    %c0_7 = arith.constant 0 : index
    %8 = vector.load %arg4[%c0_6, %c0_7] : memref<128x128xf32, #tpu.memory_space<vmem>>, vector<128x128xf32>
    %c0_8 = arith.constant 0 : index
    %c0_9 = arith.constant 0 : index
    %9 = vector.load %arg5[%c0_8, %c0_9] : memref<1x128xf32, #tpu.memory_space<vmem>>, vector<1x128xf32>
    %cst_10 = arith.constant dense<0.000000e+00> : vector<8x128xf32>
    %10 = tpu.matmul %7, %8, %cst_10 {dimension_numbers = #tpu.dot_dimension_numbers<[1], [0], [0], [1], [0, 0, 1, 1], [], []>} : vector<8x128xf32>, vector<128x128xf32>, vector<8x128xf32> -> vector<8x128xf32>
    %11 = vector.broadcast %9 : vector<1x128xf32> to vector<8x128xf32>
    %12 = arith.addf %10, %11 : vector<8x128xf32>
    %cst_11 = arith.constant 0.000000e+00 : f32
    %13 = vector.broadcast %cst_11 : f32 to vector<8x128xf32>
    %14 = arith.maximumf %12, %13 : vector<8x128xf32>
    %c0_12 = arith.constant 0 : index
    %c0_13 = arith.constant 0 : index
    %15 = vector.load %arg6[%c0_12, %c0_13] : memref<8x128xf32, #tpu.memory_space<vmem>>, vector<8x128xf32>
    tpu.vector_store %arg6[%c0_12, %c0_13], %14 {strides = array<i32>} : memref<8x128xf32, #tpu.memory_space<vmem>>, vector<8x128xf32>,
    return
  }
  func.func @transform_0(%arg0: i32) -> (i32, i32) {
    %c0_i32 = arith.constant 0 : i32
    %c0_i32_0 = arith.constant 0 : i32
    return %arg0, %c0_i32 : i32, i32
  }
  func.func @transform_1(%arg0: i32) -> (i32, i32) {
    %c0_i32 = arith.constant 0 : i32
    %c0_i32_0 = arith.constant 0 : i32
    %c0_i32_1 = arith.constant 0 : i32
    return %c0_i32, %c0_i32_0 : i32, i32
  }
  func.func @transform_2(%arg0: i32) -> (i32, i32) {
    %c0_i32 = arith.constant 0 : i32
    %c0_i32_0 = arith.constant 0 : i32
    %c0_i32_1 = arith.constant 0 : i32
    return %c0_i32, %c0_i32_0 : i32, i32
  }
  func.func @transform_3(%arg0: i32) -> (i32, i32) {
    %c0_i32 = arith.constant 0 : i32
    %c0_i32_0 = arith.constant 0 : i32
    %c0_i32_1 = arith.constant 0 : i32
    return %c0_i32, %c0_i32_0 : i32, i32
  }
  func.func @transform_4(%arg0: i32) -> (i32, i32) {
    %c0_i32 = arith.constant 0 : i32
    %c0_i32_0 = arith.constant 0 : i32
    %c0_i32_1 = arith.constant 0 : i32
    return %c0_i32, %c0_i32_0 : i32, i32
  }
  func.func @transform_5(%arg0: i32) -> (i32, i32) {
    %c0_i32 = arith.constant 0 : i32
    %c0_i32_0 = arith.constant 0 : i32
    return %arg0, %c0_i32 : i32, i32
  }
}

</mosaic_0001>

<llo_original>
// kernel: fused_mlp_forward.1
$region0: #{fused_mlp_forward.1}
  #allocation0 [shape = 'u32[]', space=smem, size = 0x4, offset = 0x4, fixed_abs, tag = 'smem constant byte address 0x4 - core index']
  #allocation1 [shape = 'u32[144,128]{1,0:T(1,128)}', space=vmem, size = 0x12000, scoped, tag = 'internal scratch']
  %s0 = inlined_call_operand.hbm [shape: f32[8,16], index: 0, kind: input, shape index: {}]
  %s1 = inlined_call_operand.hbm [shape: f32[16,128], index: 1, kind: input, shape index: {}]
  %s2 = inlined_call_operand.vmem [shape: f32[1,128], index: 2, kind: input, shape index: {}]
  %s3 = inlined_call_operand.hbm [shape: f32[128,128], index: 3, kind: input, shape index: {}]
  %s4 = inlined_call_operand.vmem [shape: f32[1,128], index: 4, kind: input, shape index: {}]
  %s5 = inlined_call_operand.hbm [shape: f32[8,128], index: 5, kind: output, shape index: {}]
  %s6 = sld [smem:[#allocation0]]
  $region42: #{fused_mlp_forward.1} parent=0
    _
  %s8 = ssub.s32 1, %s6
  %s9 = scalar_select 0, %s8, %s6
  $region1: #{fused_mlp_forward.1} parent=0
    #allocation2 [shape = 'u8[4096]{0}', space=vmem, size = 0x1000, scoped, tag = 'input window, operand 0, single buffered']
    #allocation3 [shape = 's32[1]{0}', space=sflag, size = 0x4, scoped, tag = 'scoped memory for fused_mlp_forward.1']
    #allocation4 [shape = 's32[1]{0}', space=sflag, size = 0x4, scoped, tag = 'scoped memory for fused_mlp_forward.1']
    #allocation5 [shape = 'u8[8192]{0}', space=vmem, size = 0x2000, scoped, tag = 'input window, operand 1, single buffered']
    #allocation6 [shape = 's32[1]{0}', space=sflag, size = 0x4, scoped, tag = 'scoped memory for fused_mlp_forward.1']
    #allocation7 [shape = 'u8[65536]{0}', space=vmem, size = 0x10000, scoped, tag = 'input window, operand 3, single buffered']
    #allocation8 [shape = 'u8[4096]{0}', space=vmem, size = 0x1000, scoped, tag = 'output window, operand 0, single buffered']
    %10 = vsyncpa [#allocation3], 0
    %11 = vsyncpa [#allocation6], 0
    %12 = vsyncpa [#allocation4], 0
    // Predicated region
    $region2: #{fused_mlp_forward.1} parent=1 // pred_check
      _
    $region3: #{fused_mlp_forward.1} parent=1 // pred_check_branch
      %14 = sbr.rel (0) target = $region5
    $region4: #{fused_mlp_forward.1} parent=1 // pred_region
      %s16 = ssub.s32 128, 128
      %17 = vsyncadd [#allocation3], %s16
      %s19 = sshll.u32 [#allocation2], 4
      %s20 = int_to_ptr.vmem [resolvable:$true] %s19
      %22 = dma.hbm_to_vmem [thread:$0]  %s0, 128, %s20, [#allocation3]
    $region5: #{fused_mlp_forward.1} parent=1 // pred_fallthru
      _
    // Predicated region
    $region6: #{fused_mlp_forward.1} parent=1 // pred_check
      _
    $region7: #{fused_mlp_forward.1} parent=1 // pred_check_branch
      %24 = sbr.rel (0) target = $region9
    $region8: #{fused_mlp_forward.1} parent=1 // pred_region
      %s26 = ssub.s32 256, 256
      %27 = vsyncadd [#allocation6], %s26
      %s28 = sshll.u32 [#allocation5], 4
      %s29 = int_to_ptr.vmem [resolvable:$true] %s28
      %34 = dma.hbm_to_vmem [thread:$0]  %s1, 256, %s29, [#allocation6], 128, 128, 8
    $region9: #{fused_mlp_forward.1} parent=1 // pred_fallthru
      _
    // Predicated region
    $region10: #{fused_mlp_forward.1} parent=1 // pred_check
      _
    $region11: #{fused_mlp_forward.1} parent=1 // pred_check_branch
      %36 = sbr.rel (0) target = $region13
    $region12: #{fused_mlp_forward.1} parent=1 // pred_region
      _
    $region13: #{fused_mlp_forward.1} parent=1 // pred_fallthru
      _
    // Predicated region
    $region14: #{fused_mlp_forward.1} parent=1 // pred_check
      _
    $region15: #{fused_mlp_forward.1} parent=1 // pred_check_branch
      %38 = sbr.rel (0) target = $region17
    $region16: #{fused_mlp_forward.1} parent=1 // pred_region
      %s40 = ssub.s32 2048, 2048
      %41 = vsyncadd [#allocation6], %s40
      %s42 = sshll.u32 [#allocation7], 4
      %s43 = int_to_ptr.vmem [resolvable:$true] %s42
      %48 = dma.hbm_to_vmem [thread:$0]  %s3, 2048, %s43, [#allocation6], 128, 128, 8
    $region17: #{fused_mlp_forward.1} parent=1 // pred_fallthru
      _
    // Predicated region
    $region18: #{fused_mlp_forward.1} parent=1 // pred_check
      _
    $region19: #{fused_mlp_forward.1} parent=1 // pred_check_branch
      %50 = sbr.rel (0) target = $region21
    $region20: #{fused_mlp_forward.1} parent=1 // pred_region
      _
    $region21: #{fused_mlp_forward.1} parent=1 // pred_fallthru
      _
    // Predicated region
    $region22: #{fused_mlp_forward.1} parent=1 // pred_check
      _
    $region23: #{fused_mlp_forward.1} parent=1 // pred_check_branch
      %52 = sbr.rel (0) target = $region25
    $region24: #{fused_mlp_forward.1} parent=1 // pred_region
      %53 = dma.done [#allocation3], 128
    $region25: #{fused_mlp_forward.1} parent=1 // pred_fallthru
      _
    // Predicated region
    $region26: #{fused_mlp_forward.1} parent=1 // pred_check
      _
    $region27: #{fused_mlp_forward.1} parent=1 // pred_check_branch
      %55 = sbr.rel (0) target = $region29
    $region28: #{fused_mlp_forward.1} parent=1 // pred_region
      %56 = dma.done [#allocation6], 256
    $region29: #{fused_mlp_forward.1} parent=1 // pred_fallthru
      _
    // Predicated region
    $region30: #{fused_mlp_forward.1} parent=1 // pred_check
      _
    $region31: #{fused_mlp_forward.1} parent=1 // pred_check_branch
      %58 = sbr.rel (0) target = $region33
    $region32: #{fused_mlp_forward.1} parent=1 // pred_region
      %59 = dma.done [#allocation6], 2048
    $region33: #{fused_mlp_forward.1} parent=1 // pred_fallthru
      _
    %v60 = vld [vmem:[#allocation2] sm:$0xff]
    %v61 = vld [vmem:[#allocation5] sm:$0xff]
    %v62 = vld [vmem:[#allocation5 + $0x8] sm:$0xff]
    %v63 = vld [vmem:[%s2] sm:$0x1]
    %v65 = vlaneseq
    %v66 = vshrl.u32 %v65, 7
    %v67 = vsub.s32 0, %v66
    %v68 = vrot.slane %v63, %v67
    %vm70 = vcmask 130048
    %v72 = vsel %vm70, %v60, 0
    %74 = vmatprep.subr.mxu0 0.0
    %75 = vmatpush1.msra.mxu0 %v61
    %76 = vmatprep.subr.mxu0 0.0
    %77 = vmatpush1.msra.mxu0 %v62
    %78 = vmatprep.subr.mxu0 0.0
    %79 = vmatpush1.msra.mxu0 0.0
    %80 = vmatprep.subr.mxu0 0.0
    %81 = vmatpush1.msra.mxu0 0.0
    %82 = vmatprep.subr.mxu0 0.0
    %83 = vmatpush1.msra.mxu0 0.0
    %84 = vmatprep.subr.mxu0 0.0
    %85 = vmatpush1.msra.mxu0 0.0
    %86 = vmatprep.subr.mxu0 0.0
    %87 = vmatpush1.msra.mxu0 0.0
    %88 = vmatprep.subr.mxu0 0.0
    %89 = vmatpush1.msra.mxu0 0.0
    %90 = vmatprep.subr.mxu0 0.0
    %91 = vmatpush1.msra.mxu0 0.0
    %92 = vmatprep.subr.mxu0 0.0
    %93 = vmatpush1.msra.mxu0 0.0
    %94 = vmatprep.subr.mxu0 0.0
    %95 = vmatpush1.msra.mxu0 0.0
    %96 = vmatprep.subr.mxu0 0.0
    %97 = vmatpush1.msra.mxu0 0.0
    %98 = vmatprep.subr.mxu0 0.0
    %99 = vmatpush1.msra.mxu0 0.0
    %100 = vmatprep.subr.mxu0 0.0
    %101 = vmatpush1.msra.mxu0 0.0
    %102 = vmatprep.subr.mxu0 0.0
    %103 = vmatpush1.msra.mxu0 0.0
    %104 = vmatprep.subr.mxu0 0.0
    %105 = vmatpush1.msra.mxu0 0.0
    %106 = vmatprep.subr.mxu0 0.0
    %107 = vmatpush1.msra.mxu0 0.0
    %108 = vmatprep.subr.mxu0 0.0
    %109 = vmatpush1.msra.mxu0 0.0
    %110 = vmatprep.subr.mxu0 0.0
    %111 = vmatpush1.msra.mxu0 0.0
    %112 = vmatprep.subr.mxu0 0.0
    %113 = vmatpush1.msra.mxu0 0.0
    %114 = vmatprep.subr.mxu0 0.0
    %115 = vmatpush1.msra.mxu0 0.0
    %116 = vmatprep.subr.mxu0 0.0
    %117 = vmatpush1.msra.mxu0 0.0
    %118 = vmatprep.subr.mxu0 0.0
    %119 = vmatpush1.msra.mxu0 0.0
    %120 = vmatprep.subr.mxu0 0.0
    %121 = vmatpush1.msra.mxu0 0.0
    %122 = vmatprep.subr.mxu0 0.0
    %123 = vmatpush1.msra.mxu0 0.0
    %124 = vmatprep.subr.mxu0 0.0
    %125 = vmatpush1.msra.mxu0 0.0
    %126 = vmatprep.subr.mxu0 0.0
    %127 = vmatpush1.msra.mxu0 0.0
    %128 = vmatprep.subr.mxu0 0.0
    %129 = vmatpush1.msra.mxu0 0.0
    %130 = vmatprep.subr.mxu0 0.0
    %131 = vmatpush1.msra.mxu0 0.0
    %132 = vmatprep.subr.mxu0 0.0
    %133 = vmatpush1.msra.mxu0 0.0
    %134 = vmatprep.subr.mxu0 0.0
    %135 = vmatpush1.msra.mxu0 0.0
    %136 = vmatprep.subr.mxu0 0.0
    %137 = vmatpush1.msra.mxu0 0.0
    %138 = vmatprep.mubr.f32.mxu0 0.0
    %139 = vmatmul.mubr.f32.gmra.mrb[0].mxu0 %v72
    %v140 = vpop.f32.mrb[0].mxu0
    %v141 = vadd.f32 %v68, %v140
    %v142 = vpop.f32.mrb[0].mxu0
    %143 = vdwg.mxu0
    %v144 = vmax.f32 %v141, 0.0
    %v145 = vld [vmem:[#allocation7] sm:$0xff]
    %v146 = vld [vmem:[#allocation7 + $0x8] sm:$0xff]
    %v147 = vld [vmem:[#allocation7 + $0x10] sm:$0xff]
    %v148 = vld [vmem:[#allocation7 + $0x18] sm:$0xff]
    %v149 = vld [vmem:[#allocation7 + $0x20] sm:$0xff]
    %v150 = vld [vmem:[#allocation7 + $0x28] sm:$0xff]
    %v151 = vld [vmem:[#allocation7 + $0x30] sm:$0xff]
    %v152 = vld [vmem:[#allocation7 + $0x38] sm:$0xff]
    %v153 = vld [vmem:[#allocation7 + $0x40] sm:$0xff]
    %v154 = vld [vmem:[#allocation7 + $0x48] sm:$0xff]
    %v155 = vld [vmem:[#allocation7 + $0x50] sm:$0xff]
    %v156 = vld [vmem:[#allocation7 + $0x58] sm:$0xff]
    %v157 = vld [vmem:[#allocation7 + $0x60] sm:$0xff]
    %v158 = vld [vmem:[#allocation7 + $0x68] sm:$0xff]
    %v159 = vld [vmem:[#allocation7 + $0x70] sm:$0xff]
    %v160 = vld [vmem:[#allocation7 + $0x78] sm:$0xff]
    %v161 = vld [vmem:[%s4] sm:$0x1]
    %v163 = vlaneseq
    %v164 = vshrl.u32 %v163, 7
    %v165 = vsub.s32 0, %v164
    %v166 = vrot.slane %v161, %v165
    %168 = vmatprep.subr.mxu0 0.0
    %169 = vmatpush1.msra.mxu0 %v145
    %170 = vmatprep.subr.mxu0 0.0
    %171 = vmatpush1.msra.mxu0 %v146
    %172 = vmatprep.subr.mxu0 0.0
    %173 = vmatpush1.msra.mxu0 %v147
    %174 = vmatprep.subr.mxu0 0.0
    %175 = vmatpush1.msra.mxu0 %v148
    %176 = vmatprep.subr.mxu0 0.0
    %177 = vmatpush1.msra.mxu0 %v149
    %178 = vmatprep.subr.mxu0 0.0
    %179 = vmatpush1.msra.mxu0 %v150
    %180 = vmatprep.subr.mxu0 0.0
    %181 = vmatpush1.msra.mxu0 %v151
    %182 = vmatprep.subr.mxu0 0.0
    %183 = vmatpush1.msra.mxu0 %v152
    %184 = vmatprep.subr.mxu0 0.0
    %185 = vmatpush1.msra.mxu0 %v153
    %186 = vmatprep.subr.mxu0 0.0
    %187 = vmatpush1.msra.mxu0 %v154
    %188 = vmatprep.subr.mxu0 0.0
    %189 = vmatpush1.msra.mxu0 %v155
    %190 = vmatprep.subr.mxu0 0.0
    %191 = vmatpush1.msra.mxu0 %v156
    %192 = vmatprep.subr.mxu0 0.0
    %193 = vmatpush1.msra.mxu0 %v157
    %194 = vmatprep.subr.mxu0 0.0
    %195 = vmatpush1.msra.mxu0 %v158
    %196 = vmatprep.subr.mxu0 0.0
    %197 = vmatpush1.msra.mxu0 %v159
    %198 = vmatprep.subr.mxu0 0.0
    %199 = vmatpush1.msra.mxu0 %v160
    %200 = vmatprep.subr.mxu0 0.0
    %201 = vmatpush1.msra.mxu0 0.0
    %202 = vmatprep.subr.mxu0 0.0
    %203 = vmatpush1.msra.mxu0 0.0
    %204 = vmatprep.subr.mxu0 0.0
    %205 = vmatpush1.msra.mxu0 0.0
    %206 = vmatprep.subr.mxu0 0.0
    %207 = vmatpush1.msra.mxu0 0.0
    %208 = vmatprep.subr.mxu0 0.0
    %209 = vmatpush1.msra.mxu0 0.0
    %210 = vmatprep.subr.mxu0 0.0
    %211 = vmatpush1.msra.mxu0 0.0
    %212 = vmatprep.subr.mxu0 0.0
    %213 = vmatpush1.msra.mxu0 0.0
    %214 = vmatprep.subr.mxu0 0.0
    %215 = vmatpush1.msra.mxu0 0.0
    %216 = vmatprep.subr.mxu0 0.0
    %217 = vmatpush1.msra.mxu0 0.0
    %218 = vmatprep.subr.mxu0 0.0
    %219 = vmatpush1.msra.mxu0 0.0
    %220 = vmatprep.subr.mxu0 0.0
    %221 = vmatpush1.msra.mxu0 0.0
    %222 = vmatprep.subr.mxu0 0.0
    %223 = vmatpush1.msra.mxu0 0.0
    %224 = vmatprep.subr.mxu0 0.0
    %225 = vmatpush1.msra.mxu0 0.0
    %226 = vmatprep.subr.mxu0 0.0
    %227 = vmatpush1.msra.mxu0 0.0
    %228 = vmatprep.subr.mxu0 0.0
    %229 = vmatpush1.msra.mxu0 0.0
    %230 = vmatprep.subr.mxu0 0.0
    %231 = vmatpush1.msra.mxu0 0.0
    %232 = vmatprep.mubr.f32.mxu0 0.0
    %233 = vmatmul.mubr.f32.gmra.mrb[0].mxu0 %v144
    %v234 = vpop.f32.mrb[0].mxu0
    %v235 = vadd.f32 %v166, %v234
    %v236 = vpop.f32.mrb[0].mxu0
    %237 = vdwg.mxu0
    %v238 = vmax.f32 %v235, 0.0
    %239 = vst [vmem:[#allocation8] sm:$0xff] %v238
    // Predicated region
    $region34: #{fused_mlp_forward.1} parent=1 // pred_check
      _
    $region35: #{fused_mlp_forward.1} parent=1 // pred_check_branch
      %241 = sbr.rel (0) target = $region37
    $region36: #{fused_mlp_forward.1} parent=1 // pred_region
      %s243 = ssub.s32 128, 128
      %244 = vsyncadd [#allocation4], %s243
      %s246 = sshll.u32 [#allocation8], 4
      %s247 = int_to_ptr.vmem [resolvable:$true] %s246
      %249 = dma.vmem_to_hbm [thread:$0]  %s247, 128, %s5, [#allocation4]
    $region37: #{fused_mlp_forward.1} parent=1 // pred_fallthru
      _
    // Predicated region
    $region38: #{fused_mlp_forward.1} parent=1 // pred_check
      _
    $region39: #{fused_mlp_forward.1} parent=1 // pred_check_branch
      %251 = sbr.rel (0) target = $region41
    $region40: #{fused_mlp_forward.1} parent=1 // pred_region
      %252 = dma.done [#allocation4], 128
    $region41: #{fused_mlp_forward.1} parent=1 // pred_fallthru
      _
    %253 = vsyncpa [#allocation3], 1
    %254 = vsyncpa [#allocation6], 1
    %255 = vsyncpa [#allocation4], 1

</llo_original>
